<compile_context>
chip_gen: v5e
topology: v5e:2x2
jax: 0.10.0
libtpu: 0.0.40
codegen_flags: <defaults>
</compile_context>

<pallas_src>
import jax
import jax.numpy as jnp
from jax.experimental import pallas as pl
from jax.experimental.pallas import tpu as pltpu


_ROW_TILE = 256                  # sublane tile for the large-input path
_LANE_TILE = 2048                # lane tile (multiple of 128), large inputs
_FUSE_BYTES = 4 * 1024 * 1024    # total input bytes below which all four
                                 # tensors go through one grid-less dispatch


# ---------------------------------------------------------------------------
# kernels
# ---------------------------------------------------------------------------
def _prelu_kernel(x_ref, s_ref, o_ref):
    """One tile of the fused double-PReLU: where(x >= 0, x, s * x)."""
    x = x_ref[...]
    o_ref[...] = jnp.where(x >= 0, x, s_ref[...] * x)


def _make_fused_kernel(n, slope_idx, n_slopes):
    """Grid-less kernel over n tensor views sharing n_slopes slope operands."""
    def kernel(*refs):
        # refs = (v_0 .. v_{n-1}, s_0 .. s_{n_slopes-1}, o_0 .. o_{n-1})
        for i in range(n):                       # static unroll (n == 4)
            v = refs[i][...]
            s = refs[n + slope_idx[i]][...]
            refs[n + n_slopes + i][...] = jnp.where(v >= 0, v, s * v)
    return kernel


# ---------------------------------------------------------------------------
# pallas_call wrappers
# ---------------------------------------------------------------------------
def _prelu_tiled(x2, s2):
    """Large-input path: 2-D (rows x lanes) grid, ~2 MiB blocks, parallel."""
    rows, lanes = x2.shape
    tr = rows if rows <= _ROW_TILE else _ROW_TILE
    tl = lanes if lanes <= _LANE_TILE else _LANE_TILE
    if s2.shape[0] == 1:              # (1, C) slope row: broadcast over rows
        s_spec = pl.BlockSpec((1, tl), lambda i, j: (0, j))
    else:                             # (N*C, 1) slope col: broadcast over lanes
        s_spec = pl.BlockSpec((tr, 1), lambda i, j: (i, 0))
    return pl.pallas_call(
        _prelu_kernel,
        out_shape=jax.ShapeDtypeStruct((rows, lanes), x2.dtype),
        grid=(pl.cdiv(rows, tr), pl.cdiv(lanes, tl)),
        in_specs=[pl.BlockSpec((tr, tl), lambda i, j: (i, j)), s_spec],
        out_specs=pl.BlockSpec((tr, tl), lambda i, j: (i, j)),
        compiler_params=pltpu.CompilerParams(
            dimension_semantics=("parallel", "parallel")),
    )(x2, s2)


def _prelu_fused(views):
    """Small-input path: one grid-less dispatch over all views (whole-array
    VMEM blocks, no pipeline loop -> no double-buffering overhead)."""
    n = len(views)
    slopes, slope_idx = [], []
    for _, s in views:                # dedup slope operands by identity
        for k, existing in enumerate(slopes):
            if existing is s:
                slope_idx.append(k)
                break
        else:
            slope_idx.append(len(slopes))
            slopes.append(s)
    operands = [v for v, _ in views] + slopes
    out_shapes = tuple(jax.ShapeDtypeStruct(v.shape, v.dtype) for v, _ in views)
    outs = pl.pallas_call(
        _make_fused_kernel(n, tuple(slope_idx), len(slopes)),
        out_shape=out_shapes,
    )(*operands)
    return list(outs)


# ---------------------------------------------------------------------------
# model forward
# ---------------------------------------------------------------------------
def _as_2d(t, s_eff, cache):
    """View-only 2-D layout + broadcastable fused-slope block (no transposes)."""
    N, C = t.shape[0], t.shape[1]
    S = 1
    for d in t.shape[2:]:
        S *= d
    dt = t.dtype
    if S == 1:
        key = ("row", C, str(dt))
        if key not in cache:
            cache[key] = s_eff.astype(dt).reshape(1, C)
        return t.reshape(N, C), cache[key]
    key = ("col", N, C, str(dt))
    if key not in cache:
        cache[key] = jnp.broadcast_to(
            s_eff.astype(dt)[None, :], (N, C)).reshape(N * C, 1)
    return t.reshape(N * C, S), cache[key]


def model_forward(x, y, z, w, a0, a1):
    tensors = (x, y, z, w)
    # Sign-aware algebraic fusion of prelu_1(prelu_0(v)):
    #   v >= 0           -> v
    #   v < 0, a0 >= 0   -> a0*v <= 0 hits prelu_1's negative branch -> a1*a0*v
    #   v < 0, a0 <  0   -> a0*v >= 0 passes prelu_1 unchanged       -> a0*v
    a0f = a0.astype(jnp.float32)
    a1f = a1.astype(jnp.float32).reshape(())
    s_eff = jnp.where(a0f >= 0, a0f * a1f, a0f)          # (C,) effective slope

    cache = {}
    views = [_as_2d(t, s_eff, cache) for t in tensors]

    total_bytes = sum(t.size * t.dtype.itemsize for t in tensors)
    if total_bytes <= _FUSE_BYTES:
        outs = _prelu_fused(views)                 # one dispatch for all four
    else:
        outs = [_prelu_tiled(v, s) for v, s in views]
    return tuple(o.reshape(t.shape) for o, t in zip(outs, tensors))


# ---------------------------------------------------------------------------
# pure-JAX reference (two sequential PReLUs, as in the PyTorch module)
# ---------------------------------------------------------------------------
def _ref_prelu(t, a):
    a = a.reshape((1, -1) + (1,) * (t.ndim - 2))
    return jnp.where(t >= 0, t, a * t)


def _ref_forward(x, y, z, w, a0, a1):
    outs = []
    for t in (x, y, z, w):
        t = _ref_prelu(t, a0)
        t = _ref_prelu(t, a1)
        outs.append(t)
    return tuple(outs)


if __name__ == "__main__":
    # nn.PReLU defaults: prelu_0 has 12 slopes init 0.25; prelu_1 init 0.12
    a0 = jnp.full((12,), 0.25, dtype=jnp.float32)
    a1 = jnp.full((1,), 0.12, dtype=jnp.float32)

    key = jax.random.PRNGKey(0)
    kx, ky, kz, kw = jax.random.split(key, 4)
    x = jax.random.normal(kx, (2, 12), dtype=jnp.float32)
    y = jax.random.normal(ky, (2, 12, 16), dtype=jnp.float32)
    z = jax.random.normal(kz, (2, 12, 8, 16), dtype=jnp.float32)
    w = jax.random.normal(kw, (2, 12, 4, 8, 16), dtype=jnp.float32)

    fwd = jax.jit(model_forward)
    outs = jax.block_until_ready(fwd(x, y, z, w, a0, a1))

    refs = _ref_forward(x, y, z, w, a0, a1)
    for o, r in zip(outs, refs):
        assert o.shape == r.shape and o.dtype == r.dtype
        assert jnp.allclose(o, r, atol=1e-6, rtol=1e-6)

    print("KERNEL_OK")
</pallas_src>

<mosaic_0001>
module attributes {stable_mosaic.version = 11 : i64} {
  func.func @kernel(%arg0: memref<2x12xf32, #tpu.memory_space<vmem>>, %arg1: memref<24x16xf32, #tpu.memory_space<vmem>>, %arg2: memref<24x128xf32, #tpu.memory_space<vmem>>, %arg3: memref<24x512xf32, #tpu.memory_space<vmem>>, %arg4: memref<1x12xf32, #tpu.memory_space<vmem>>, %arg5: memref<24x1xf32, #tpu.memory_space<vmem>>, %arg6: memref<2x12xf32, #tpu.memory_space<vmem>>, %arg7: memref<24x16xf32, #tpu.memory_space<vmem>>, %arg8: memref<24x128xf32, #tpu.memory_space<vmem>>, %arg9: memref<24x512xf32, #tpu.memory_space<vmem>>) attributes {dimension_semantics = [], scalar_prefetch = 0 : i64, scratch_operands = 0 : i64, tpu.core_type = #tpu.core_type<tc>} {
    %c0 = arith.constant 0 : index
    %c0_0 = arith.constant 0 : index
    %0 = vector.load %arg0[%c0, %c0_0] : memref<2x12xf32, #tpu.memory_space<vmem>>, vector<2x12xf32>
    %c0_1 = arith.constant 0 : index
    %c0_2 = arith.constant 0 : index
    %1 = vector.load %arg4[%c0_1, %c0_2] : memref<1x12xf32, #tpu.memory_space<vmem>>, vector<1x12xf32>
    %cst = arith.constant 0.000000e+00 : f32
    %2 = vector.broadcast %cst : f32 to vector<2x12xf32>
    %3 = arith.cmpf oge, %0, %2 : vector<2x12xf32>
    %4 = vector.broadcast %1 : vector<1x12xf32> to vector<2x12xf32>
    %5 = arith.mulf %4, %0 : vector<2x12xf32>
    %6 = arith.select %3, %0, %5 : vector<2x12xi1>, vector<2x12xf32>
    %c0_3 = arith.constant 0 : index
    %c0_4 = arith.constant 0 : index
    %7 = vector.load %arg6[%c0_3, %c0_4] : memref<2x12xf32, #tpu.memory_space<vmem>>, vector<2x12xf32>
    tpu.vector_store %arg6[%c0_3, %c0_4], %6 {strides = array<i32>} : memref<2x12xf32, #tpu.memory_space<vmem>>, vector<2x12xf32>,
    %c0_5 = arith.constant 0 : index
    %c0_6 = arith.constant 0 : index
    %8 = vector.load %arg1[%c0_5, %c0_6] : memref<24x16xf32, #tpu.memory_space<vmem>>, vector<24x16xf32>
    %c0_7 = arith.constant 0 : index
    %c0_8 = arith.constant 0 : index
    %9 = vector.load %arg5[%c0_7, %c0_8] : memref<24x1xf32, #tpu.memory_space<vmem>>, vector<24x1xf32>
    %cst_9 = arith.constant 0.000000e+00 : f32
    %10 = vector.broadcast %cst_9 : f32 to vector<24x16xf32>
    %11 = arith.cmpf oge, %8, %10 : vector<24x16xf32>
    %12 = vector.broadcast %9 : vector<24x1xf32> to vector<24x16xf32>
    %13 = arith.mulf %12, %8 : vector<24x16xf32>
    %14 = arith.select %11, %8, %13 : vector<24x16xi1>, vector<24x16xf32>
    %c0_10 = arith.constant 0 : index
    %c0_11 = arith.constant 0 : index
    %15 = vector.load %arg7[%c0_10, %c0_11] : memref<24x16xf32, #tpu.memory_space<vmem>>, vector<24x16xf32>
    tpu.vector_store %arg7[%c0_10, %c0_11], %14 {strides = array<i32>} : memref<24x16xf32, #tpu.memory_space<vmem>>, vector<24x16xf32>,
    %c0_12 = arith.constant 0 : index
    %c0_13 = arith.constant 0 : index
    %16 = vector.load %arg2[%c0_12, %c0_13] : memref<24x128xf32, #tpu.memory_space<vmem>>, vector<24x128xf32>
    %c0_14 = arith.constant 0 : index
    %c0_15 = arith.constant 0 : index
    %17 = vector.load %arg5[%c0_14, %c0_15] : memref<24x1xf32, #tpu.memory_space<vmem>>, vector<24x1xf32>
    %cst_16 = arith.constant 0.000000e+00 : f32
    %18 = vector.broadcast %cst_16 : f32 to vector<24x128xf32>
    %19 = arith.cmpf oge, %16, %18 : vector<24x128xf32>
    %20 = vector.broadcast %17 : vector<24x1xf32> to vector<24x128xf32>
    %21 = arith.mulf %20, %16 : vector<24x128xf32>
    %22 = arith.select %19, %16, %21 : vector<24x128xi1>, vector<24x128xf32>
    %c0_17 = arith.constant 0 : index
    %c0_18 = arith.constant 0 : index
    %23 = vector.load %arg8[%c0_17, %c0_18] : memref<24x128xf32, #tpu.memory_space<vmem>>, vector<24x128xf32>
    tpu.vector_store %arg8[%c0_17, %c0_18], %22 {strides = array<i32>} : memref<24x128xf32, #tpu.memory_space<vmem>>, vector<24x128xf32>,
    %c0_19 = arith.constant 0 : index
    %c0_20 = arith.constant 0 : index
    %24 = vector.load %arg3[%c0_19, %c0_20] : memref<24x512xf32, #tpu.memory_space<vmem>>, vector<24x512xf32>
    %c0_21 = arith.constant 0 : index
    %c0_22 = arith.constant 0 : index
    %25 = vector.load %arg5[%c0_21, %c0_22] : memref<24x1xf32, #tpu.memory_space<vmem>>, vector<24x1xf32>
    %cst_23 = arith.constant 0.000000e+00 : f32
    %26 = vector.broadcast %cst_23 : f32 to vector<24x512xf32>
    %27 = arith.cmpf oge, %24, %26 : vector<24x512xf32>
    %28 = vector.broadcast %25 : vector<24x1xf32> to vector<24x512xf32>
    %29 = arith.mulf %28, %24 : vector<24x512xf32>
    %30 = arith.select %27, %24, %29 : vector<24x512xi1>, vector<24x512xf32>
    %c0_24 = arith.constant 0 : index
    %c0_25 = arith.constant 0 : index
    %31 = vector.load %arg9[%c0_24, %c0_25] : memref<24x512xf32, #tpu.memory_space<vmem>>, vector<24x512xf32>
    tpu.vector_store %arg9[%c0_24, %c0_25], %30 {strides = array<i32>} : memref<24x512xf32, #tpu.memory_space<vmem>>, vector<24x512xf32>,
    return
  }
}

</mosaic_0001>

<llo_original>
// kernel: model_forward.1
$region0: #{model_forward.1}
  #allocation0 [shape = 'u32[]', space=smem, size = 0x4, offset = 0x4, fixed_abs, tag = 'smem constant byte address 0x4 - core index']
  #allocation1 [shape = 'u32[72,128]{1,0:T(1,128)}', space=vmem, size = 0x9000, scoped, tag = 'internal scratch']
  %s0 = inlined_call_operand.vmem [shape: f32[2,12], index: 0, kind: input, shape index: {}]
  %s1 = inlined_call_operand.vmem [shape: f32[24,16], index: 1, kind: input, shape index: {}]
  %s2 = inlined_call_operand.vmem [shape: f32[24,128], index: 2, kind: input, shape index: {}]
  %s3 = inlined_call_operand.vmem [shape: f32[24,512], index: 3, kind: input, shape index: {}]
  %s4 = inlined_call_operand.vmem [shape: f32[1,12], index: 4, kind: input, shape index: {}]
  %s5 = inlined_call_operand.vmem [shape: f32[24,1], index: 5, kind: input, shape index: {}]
  %s6 = inlined_call_operand.hbm [shape: f32[2,12], index: 6, kind: output, shape index: {0}]
  %s7 = inlined_call_operand.vmem [shape: f32[24,16], index: 7, kind: output, shape index: {1}]
  %s8 = inlined_call_operand.vmem [shape: f32[24,128], index: 8, kind: output, shape index: {2}]
  %s9 = inlined_call_operand.vmem [shape: f32[24,512], index: 9, kind: output, shape index: {3}]
  %10 = xla_tuple %s6, %s7, %s8, %s9
  %s11 = sld [smem:[#allocation0]]
  $region58: #{model_forward.1} parent=0
    _
  %s13 = ssub.s32 1, %s11
  %s14 = scalar_select 0, %s13, %s11
  $region1: #{model_forward.1} parent=0
    #allocation2 [shape = 'u8[1024]{0}', space=vmem, size = 0x400, scoped, tag = 'output window, operand 0, single buffered']
    #allocation3 [shape = 's32[1]{0}', space=sflag, size = 0x4, scoped, tag = 'scoped memory for model_forward.1']
    %15 = vsyncpa [#allocation3], 0
    // Predicated region
    $region2: #{model_forward.1} parent=1 // pred_check
      _
    $region3: #{model_forward.1} parent=1 // pred_check_branch
      %17 = sbr.rel (0) target = $region5
    $region4: #{model_forward.1} parent=1 // pred_region
      _
    $region5: #{model_forward.1} parent=1 // pred_fallthru
      _
    // Predicated region
    $region6: #{model_forward.1} parent=1 // pred_check
      _
    $region7: #{model_forward.1} parent=1 // pred_check_branch
      %19 = sbr.rel (0) target = $region9
    $region8: #{model_forward.1} parent=1 // pred_region
      _
    $region9: #{model_forward.1} parent=1 // pred_fallthru
      _
    // Predicated region
    $region10: #{model_forward.1} parent=1 // pred_check
      _
    $region11: #{model_forward.1} parent=1 // pred_check_branch
      %21 = sbr.rel (0) target = $region13
    $region12: #{model_forward.1} parent=1 // pred_region
      _
    $region13: #{model_forward.1} parent=1 // pred_fallthru
      _
    // Predicated region
    $region14: #{model_forward.1} parent=1 // pred_check
      _
    $region15: #{model_forward.1} parent=1 // pred_check_branch
      %23 = sbr.rel (0) target = $region17
    $region16: #{model_forward.1} parent=1 // pred_region
      _
    $region17: #{model_forward.1} parent=1 // pred_fallthru
      _
    // Predicated region
    $region18: #{model_forward.1} parent=1 // pred_check
      _
    $region19: #{model_forward.1} parent=1 // pred_check_branch
      %25 = sbr.rel (0) target = $region21
    $region20: #{model_forward.1} parent=1 // pred_region
      _
    $region21: #{model_forward.1} parent=1 // pred_fallthru
      _
    // Predicated region
    $region22: #{model_forward.1} parent=1 // pred_check
      _
    $region23: #{model_forward.1} parent=1 // pred_check_branch
      %27 = sbr.rel (0) target = $region25
    $region24: #{model_forward.1} parent=1 // pred_region
      _
    $region25: #{model_forward.1} parent=1 // pred_fallthru
      _
    %v28 = vld [vmem:[%s0] sm:$0x3]
    %v29 = vld [vmem:[%s4] sm:$0x1]
    %vm30 = vcmp.ge.f32.partialorder %v28, 0.0
    %v32 = vperm.slane %v29, 0
    %v34 = vmul.f32 %v32, %v28
    %v35 = vsel %vm30, %v28, %v34
    %vm36 = vcmask 91136
    %37 = vst.msk [vmem:[#allocation2] sm:$0x3] %vm36, %v35
    %v38 = vld [vmem:[%s1] sm:$0xff]
    %v39 = vld [vmem:[%s1 + $0x8] sm:$0xff]
    %v40 = vld [vmem:[%s1 + $0x10] sm:$0xff]
    %v41 = vld [vmem:[%s5] sm:$0xff]
    %v42 = vld [vmem:[%s5 + $0x8] sm:$0xff]
    %v43 = vld [vmem:[%s5 + $0x10] sm:$0xff]
    %vm44 = vcmp.ge.f32.partialorder %v38, 0.0
    %vm45 = vcmp.ge.f32.partialorder %v39, 0.0
    %vm46 = vcmp.ge.f32.partialorder %v40, 0.0
    %48 = vset.pattern.permute.xlu0 0
    %49 = vperm.xlu0 %48, %v41
    %v50 = vpop.permute.xlu0 %49
    %53 = vset.pattern.permute.xlu0 0
    %54 = vperm.xlu0 %53, %v42
    %v55 = vpop.permute.xlu0 %54
    %58 = vset.pattern.permute.xlu0 0
    %59 = vperm.xlu0 %58, %v43
    %v60 = vpop.permute.xlu0 %59
    %v62 = vmul.f32 %v50, %v38
    %v63 = vmul.f32 %v55, %v39
    %v64 = vmul.f32 %v60, %v40
    %v65 = vsel %vm44, %v38, %v62
    %v66 = vsel %vm45, %v39, %v63
    %v67 = vsel %vm46, %v40, %v64
    %vm68 = vcmask 130048
    %69 = vst.msk [vmem:[%s7] sm:$0xff] %vm68, %v65
    %70 = vst.msk [vmem:[%s7 + $0x8] sm:$0xff] %vm68, %v66
    %71 = vst.msk [vmem:[%s7 + $0x10] sm:$0xff] %vm68, %v67
    %v72 = vld [vmem:[%s2] sm:$0xff]
    %v73 = vld [vmem:[%s2 + $0x8] sm:$0xff]
    %v74 = vld [vmem:[%s2 + $0x10] sm:$0xff]
    %v75 = vld [vmem:[%s5] sm:$0xff]
    %v76 = vld [vmem:[%s5 + $0x8] sm:$0xff]
    %v77 = vld [vmem:[%s5 + $0x10] sm:$0xff]
    %vm78 = vcmp.ge.f32.partialorder %v72, 0.0
    %vm79 = vcmp.ge.f32.partialorder %v73, 0.0
    %vm80 = vcmp.ge.f32.partialorder %v74, 0.0
    %82 = vset.pattern.permute.xlu0 0
    %83 = vperm.xlu0 %82, %v75
    %v84 = vpop.permute.xlu0 %83
    %87 = vset.pattern.permute.xlu0 0
    %88 = vperm.xlu0 %87, %v76
    %v89 = vpop.permute.xlu0 %88
    %92 = vset.pattern.permute.xlu0 0
    %93 = vperm.xlu0 %92, %v77
    %v94 = vpop.permute.xlu0 %93
    %v96 = vmul.f32 %v84, %v72
    %v97 = vmul.f32 %v89, %v73
    %v98 = vmul.f32 %v94, %v74
    %v99 = vsel %vm78, %v72, %v96
    %v100 = vsel %vm79, %v73, %v97
    %v101 = vsel %vm80, %v74, %v98
    %102 = vst [vmem:[%s8] sm:$0xff] %v99
    %103 = vst [vmem:[%s8 + $0x8] sm:$0xff] %v100
    %104 = vst [vmem:[%s8 + $0x10] sm:$0xff] %v101
    %v105 = vld [vmem:[%s3] sm:$0xff]
    %v106 = vld [vmem:[%s3 + $0x8] sm:$0xff]
    %v107 = vld [vmem:[%s3 + $0x10] sm:$0xff]
    %v108 = vld [vmem:[%s3 + $0x18] sm:$0xff]
    %v109 = vld [vmem:[%s3 + $0x20] sm:$0xff]
    %v110 = vld [vmem:[%s3 + $0x28] sm:$0xff]
    %v111 = vld [vmem:[%s3 + $0x30] sm:$0xff]
    %v112 = vld [vmem:[%s3 + $0x38] sm:$0xff]
    %v113 = vld [vmem:[%s3 + $0x40] sm:$0xff]
    %v114 = vld [vmem:[%s3 + $0x48] sm:$0xff]
    %v115 = vld [vmem:[%s3 + $0x50] sm:$0xff]
    %v116 = vld [vmem:[%s3 + $0x58] sm:$0xff]
    %v117 = vld [vmem:[%s5] sm:$0xff]
    %v118 = vld [vmem:[%s5 + $0x8] sm:$0xff]
    %v119 = vld [vmem:[%s5 + $0x10] sm:$0xff]
    %vm120 = vcmp.ge.f32.partialorder %v105, 0.0
    %vm121 = vcmp.ge.f32.partialorder %v106, 0.0
    %vm122 = vcmp.ge.f32.partialorder %v107, 0.0
    %vm123 = vcmp.ge.f32.partialorder %v108, 0.0
    %vm124 = vcmp.ge.f32.partialorder %v109, 0.0
    %vm125 = vcmp.ge.f32.partialorder %v110, 0.0
    %vm126 = vcmp.ge.f32.partialorder %v111, 0.0
    %vm127 = vcmp.ge.f32.partialorder %v112, 0.0
    %vm128 = vcmp.ge.f32.partialorder %v113, 0.0
    %vm129 = vcmp.ge.f32.partialorder %v114, 0.0
    %vm130 = vcmp.ge.f32.partialorder %v115, 0.0
    %vm131 = vcmp.ge.f32.partialorder %v116, 0.0
    %133 = vset.pattern.permute.xlu0 0
    %134 = vperm.xlu0 %133, %v117
    %v135 = vpop.permute.xlu0 %134
    %138 = vset.pattern.permute.xlu0 0
    %139 = vperm.xlu0 %138, %v118
    %v140 = vpop.permute.xlu0 %139
    %143 = vset.pattern.permute.xlu0 0
    %144 = vperm.xlu0 %143, %v119
    %v145 = vpop.permute.xlu0 %144
    %v147 = vmul.f32 %v135, %v105
    %v148 = vmul.f32 %v135, %v106
    %v149 = vmul.f32 %v135, %v107
    %v150 = vmul.f32 %v135, %v108
    %v151 = vmul.f32 %v140, %v109
    %v152 = vmul.f32 %v140, %v110
    %v153 = vmul.f32 %v140, %v111
    %v154 = vmul.f32 %v140, %v112
    %v155 = vmul.f32 %v145, %v113
    %v156 = vmul.f32 %v145, %v114
    %v157 = vmul.f32 %v145, %v115
    %v158 = vmul.f32 %v145, %v116
    %v159 = vsel %vm120, %v105, %v147
    %v160 = vsel %vm121, %v106, %v148
    %v161 = vsel %vm122, %v107, %v149
    %v162 = vsel %vm123, %v108, %v150
    %v163 = vsel %vm124, %v109, %v151
    %v164 = vsel %vm125, %v110, %v152
    %v165 = vsel %vm126, %v111, %v153
    %v166 = vsel %vm127, %v112, %v154
    %v167 = vsel %vm128, %v113, %v155
    %v168 = vsel %vm129, %v114, %v156
    %v169 = vsel %vm130, %v115, %v157
    %v170 = vsel %vm131, %v116, %v158
    %171 = vst [vmem:[%s9] sm:$0xff] %v159
    %172 = vst [vmem:[%s9 + $0x8] sm:$0xff] %v160
    %173 = vst [vmem:[%s9 + $0x10] sm:$0xff] %v161
    %174 = vst [vmem:[%s9 + $0x18] sm:$0xff] %v162
    %175 = vst [vmem:[%s9 + $0x20] sm:$0xff] %v163
    %176 = vst [vmem:[%s9 + $0x28] sm:$0xff] %v164
    %177 = vst [vmem:[%s9 + $0x30] sm:$0xff] %v165
    %178 = vst [vmem:[%s9 + $0x38] sm:$0xff] %v166
    %179 = vst [vmem:[%s9 + $0x40] sm:$0xff] %v167
    %180 = vst [vmem:[%s9 + $0x48] sm:$0xff] %v168
    %181 = vst [vmem:[%s9 + $0x50] sm:$0xff] %v169
    %182 = vst [vmem:[%s9 + $0x58] sm:$0xff] %v170
    // Predicated region
    $region26: #{model_forward.1} parent=1 // pred_check
      _
    $region27: #{model_forward.1} parent=1 // pred_check_branch
      %184 = sbr.rel (0) target = $region29
    $region28: #{model_forward.1} parent=1 // pred_region
      %186 = vsyncadd [#allocation3], 0
      %s188 = sshll.u32 [#allocation2], 4
      %s189 = int_to_ptr.vmem [resolvable:$true] %s188
      %s190 = sshll.u32 %s6, 4
      %s191 = int_to_ptr.hbm [resolvable:$true] %s190
      %193 = dma.vmem_to_hbm [thread:$0]  %s189, 32, %s191, [#allocation3]
    $region29: #{model_forward.1} parent=1 // pred_fallthru
      _
    // Predicated region
    $region30: #{model_forward.1} parent=1 // pred_check
      _
    $region31: #{model_forward.1} parent=1 // pred_check_branch
      %195 = sbr.rel (0) target = $region33
    $region32: #{model_forward.1} parent=1 // pred_region
      _
    $region33: #{model_forward.1} parent=1 // pred_fallthru
      _
    // Predicated region
    $region34: #{model_forward.1} parent=1 // pred_check
      _
    $region35: #{model_forward.1} parent=1 // pred_check_branch
      %197 = sbr.rel (0) target = $region37
    $region36: #{model_forward.1} parent=1 // pred_region
      _
    $region37: #{model_forward.1} parent=1 // pred_fallthru
      _
    // Predicated region
    $region38: #{model_forward.1} parent=1 // pred_check
      _
    $region39: #{model_forward.1} parent=1 // pred_check_branch
      %199 = sbr.rel (0) target = $region41
    $region40: #{model_forward.1} parent=1 // pred_region
      _
    $region41: #{model_forward.1} parent=1 // pred_fallthru
      _
    // Predicated region
    $region42: #{model_forward.1} parent=1 // pred_check
      _
    $region43: #{model_forward.1} parent=1 // pred_check_branch
      %201 = sbr.rel (0) target = $region45
    $region44: #{model_forward.1} parent=1 // pred_region
      %203 = dma.done [#allocation3], 32
    $region45: #{model_forward.1} parent=1 // pred_fallthru
      _
    // Predicated region
    $region46: #{model_forward.1} parent=1 // pred_check
      _
    $region47: #{model_forward.1} parent=1 // pred_check_branch
      %205 = sbr.rel (0) target = $region49
    $region48: #{model_forward.1} parent=1 // pred_region
      _
    $region49: #{model_forward.1} parent=1 // pred_fallthru
      _
    // Predicated region
    $region50: #{model_forward.1} parent=1 // pred_check
      _
    $region51: #{model_forward.1} parent=1 // pred_check_branch
      %207 = sbr.rel (0) target = $region53
    $region52: #{model_forward.1} parent=1 // pred_region
      _
    $region53: #{model_forward.1} parent=1 // pred_fallthru
      _
    // Predicated region
    $region54: #{model_forward.1} parent=1 // pred_check
      _
    $region55: #{model_forward.1} parent=1 // pred_check_branch
      %209 = sbr.rel (0) target = $region57
    $region56: #{model_forward.1} parent=1 // pred_region
      _
    $region57: #{model_forward.1} parent=1 // pred_fallthru
      _
    %210 = vsyncpa [#allocation3], 1

</llo_original>
